<compile_context>
chip_gen: v5e
topology: v5e:2x2
jax: 0.10.0
libtpu: 0.0.40
codegen_flags: <defaults>
</compile_context>

<pallas_src>
import jax
import jax.numpy as jnp
from jax.experimental import pallas as pl
from jax.experimental.pallas import tpu as pltpu

_SLOPE = 0.2  # matches nn.LeakyReLU(0.2) in the PyTorch module


def _leaky_relu(x, slope=_SLOPE):
    # For slope in (0, 1): max(x, slope*x) == leaky_relu(x, slope); one max
    # instead of compare+select.
    return jnp.maximum(x, slope * x)


def _round_up(n, m):
    return ((n + m - 1) // m) * m


def ae_encoder_kernel(x_ref, w1_ref, b1_ref, w2_ref, b2_ref, w3_ref, b3_ref,
                      out_ref):
    """One batch tile: 3 MXU matmuls (bf16 in / f32 acc) + 2 LeakyReLU (VPU)."""
    cdt = w1_ref.dtype  # compute dtype fed to the MXU (bf16 or f32)
    x = x_ref[...].astype(cdt)
    h1 = jnp.dot(x, w1_ref[...], preferred_element_type=jnp.float32) + b1_ref[...]
    h1 = _leaky_relu(h1).astype(cdt)          # cast immediately -> bf16 live range
    h2 = jnp.dot(h1, w2_ref[...], preferred_element_type=jnp.float32) + b2_ref[...]
    h2 = _leaky_relu(h2).astype(cdt)
    z = jnp.dot(h2, w3_ref[...], preferred_element_type=jnp.float32) + b3_ref[...]
    out_ref[...] = z.astype(out_ref.dtype)


def ae_encoder(x, params, *, use_bf16=True, max_tile_rows=4096,
               vmem_budget_bytes=24 << 20):
    """x: (N, n_input) f32. params: dict of (in,out) weights and (1,out) biases."""
    w1, b1 = params["w1"], params["b1"]
    w2, b2 = params["w2"], params["b2"]
    w3, b3 = params["w3"], params["b3"]

    n, n_input = x.shape
    e1, e2, n_z = w1.shape[1], w2.shape[1], w3.shape[1]

    cdt = jnp.bfloat16 if use_bf16 else jnp.float32
    csz = jnp.dtype(cdt).itemsize

    # ---- Tile-row selection ------------------------------------------------
    # Clamp the tile so double-buffered x/out tiles + intermediates stay well
    # inside the scoped-VMEM default on every chip (v7x has only 64 MiB total
    # VMEM / 32 MiB scoped default, half of v5e/v6e).
    per_row = (2 * 4 * n_input            # x tile (f32) x 2 pipeline buffers
               + 2 * 4 * n_z              # out tile (f32) x 2 pipeline buffers
               + (csz + 4) * (e1 + e2))   # h1/h2 (f32 acc + compute-dtype copy)
    row_cap = max(8, (vmem_budget_bytes // max(per_row, 1)) // 8 * 8)
    max_tile_rows = max(8, min(max_tile_rows, row_cap))

    # Balanced tile: avoid an almost-empty last tile, and force >=2 grid steps
    # for larger batches so dimension_semantics=("parallel",) actually shards
    # the batch across v7x's two TensorCores.
    steps = max(pl.cdiv(n, max_tile_rows), 2 if n >= 1024 else 1)
    tm = _round_up(pl.cdiv(n, steps), 8)
    steps = pl.cdiv(n, tm)
    n_pad = steps * tm

    # Only pad the batch dim, and only when needed (never for n % tm == 0).
    x_in = x if n_pad == n else jnp.pad(x, ((0, n_pad - n), (0, 0)))

    # Weights/biases are tiny; pre-cast weights to the MXU compute dtype once.
    w1c, w2c, w3c = (w.astype(cdt) for w in (w1, w2, w3))
    b1f, b2f, b3f = (b.astype(jnp.float32) for b in (b1, b2, b3))

    def resident(a):  # full-array block, constant index_map -> stays in VMEM
        return pl.BlockSpec(a.shape, lambda i: (0, 0))

    flops = 2 * n_pad * (n_input * e1 + e1 * e2 + e2 * n_z)
    bytes_accessed = (
        x_in.size * x_in.dtype.itemsize + n_pad * n_z * 4 +
        sum(a.size * a.dtype.itemsize
            for a in (w1c, b1f, w2c, b2f, w3c, b3f)))

    out_p = pl.pallas_call(
        ae_encoder_kernel,
        out_shape=jax.ShapeDtypeStruct((n_pad, n_z), jnp.float32),
        grid=(steps,),
        in_specs=[
            pl.BlockSpec((tm, n_input), lambda i: (i, 0)),   # x: tiled over batch
            resident(w1c), resident(b1f),
            resident(w2c), resident(b2f),
            resident(w3c), resident(b3f),
        ],
        out_specs=pl.BlockSpec((tm, n_z), lambda i: (i, 0)),
        compiler_params=pltpu.CompilerParams(
            dimension_semantics=("parallel",)),
        cost_estimate=pl.CostEstimate(flops=flops, transcendentals=0,
                                      bytes_accessed=bytes_accessed),
    )(x_in, w1c, b1f, w2c, b2f, w3c, b3f)

    return out_p if n_pad == n else out_p[:n]


def init_params(key, n_input, ae_n_enc_1, ae_n_enc_2, n_z):
    """Deterministic synthetic init (uniform, roughly matching nn.Linear scale)."""
    ks = jax.random.split(key, 6)

    def lin(kw, kb, fan_in, fan_out):
        bound = 1.0 / jnp.sqrt(fan_in)
        w = jax.random.uniform(kw, (fan_in, fan_out), jnp.float32, -bound, bound)
        b = jax.random.uniform(kb, (1, fan_out), jnp.float32, -bound, bound)
        return w, b

    w1, b1 = lin(ks[0], ks[1], n_input, ae_n_enc_1)
    w2, b2 = lin(ks[2], ks[3], ae_n_enc_1, ae_n_enc_2)
    w3, b3 = lin(ks[4], ks[5], ae_n_enc_2, n_z)
    return dict(w1=w1, b1=b1, w2=w2, b2=b2, w3=w3, b3=b3)


def ae_encoder_ref(x, p, compute_dtype=jnp.float32):
    """Pure-JAX reference of the PyTorch forward (optionally bf16-emulating)."""
    c = lambda a: a.astype(compute_dtype)
    h1 = _leaky_relu(jnp.dot(c(x), c(p["w1"]),
                             preferred_element_type=jnp.float32) + p["b1"])
    h2 = _leaky_relu(jnp.dot(c(h1), c(p["w2"]),
                             preferred_element_type=jnp.float32) + p["b2"])
    return jnp.dot(c(h2), c(p["w3"]),
                   preferred_element_type=jnp.float32) + p["b3"]


if __name__ == "__main__":
    # Shapes implied by the module: x is (batch, n_input).
    batch, n_input, ae_n_enc_1, ae_n_enc_2, n_z = 8, 32, 64, 32, 16

    key = jax.random.PRNGKey(0)
    kx, kp = jax.random.split(key)
    x = jax.random.normal(kx, (batch, n_input), jnp.float32)
    params = init_params(kp, n_input, ae_n_enc_1, ae_n_enc_2, n_z)

    z_ae = jax.block_until_ready(ae_encoder(x, params))
    assert z_ae.shape == (batch, n_z)

    # Tight check against a bf16-operand / f32-accumulate reference (what the
    # MXU actually computes).
    z_ref_bf16 = ae_encoder_ref(x, params, compute_dtype=jnp.bfloat16)
    assert jnp.allclose(z_ae, z_ref_bf16, atol=1e-3, rtol=1e-3)

    # Looser check against the full-f32 PyTorch-semantics reference
    # (bf16 operand rounding is the only difference).
    z_ref_f32 = ae_encoder_ref(x, params, compute_dtype=jnp.float32)
    assert jnp.allclose(z_ae, z_ref_f32, atol=3e-2, rtol=3e-2)

    print("KERNEL_OK")
</pallas_src>

<mosaic_0001>
module attributes {stable_mosaic.version = 11 : i64} {
  func.func @ae_encoder_kernel(%arg0: i32, %arg1: memref<8x32xf32, #tpu.memory_space<vmem>>, %arg2: memref<32x64xbf16, #tpu.memory_space<vmem>>, %arg3: memref<1x64xf32, #tpu.memory_space<vmem>>, %arg4: memref<64x32xbf16, #tpu.memory_space<vmem>>, %arg5: memref<1x32xf32, #tpu.memory_space<vmem>>, %arg6: memref<32x16xbf16, #tpu.memory_space<vmem>>, %arg7: memref<1x16xf32, #tpu.memory_space<vmem>>, %arg8: memref<8x16xf32, #tpu.memory_space<vmem>>) attributes {dimension_semantics = [#tpu.dimension_semantics<parallel>], iteration_bounds = array<i64: 1>, scalar_prefetch = 0 : i64, scratch_operands = 0 : i64, tpu.core_type = #tpu.core_type<tc>, window_params = [{transform_indices = @transform_0, window_bounds = array<i64: 8, 32>}, {pipeline_mode = #tpu.pipeline_mode<synchronous>, transform_indices = @transform_1, window_bounds = array<i64: 32, 64>}, {pipeline_mode = #tpu.pipeline_mode<synchronous>, transform_indices = @transform_2, window_bounds = array<i64: 1, 64>}, {pipeline_mode = #tpu.pipeline_mode<synchronous>, transform_indices = @transform_3, window_bounds = array<i64: 64, 32>}, {pipeline_mode = #tpu.pipeline_mode<synchronous>, transform_indices = @transform_4, window_bounds = array<i64: 1, 32>}, {pipeline_mode = #tpu.pipeline_mode<synchronous>, transform_indices = @transform_5, window_bounds = array<i64: 32, 16>}, {pipeline_mode = #tpu.pipeline_mode<synchronous>, transform_indices = @transform_6, window_bounds = array<i64: 1, 16>}, {transform_indices = @transform_7, window_bounds = array<i64: 8, 16>}]} {
    %c0 = arith.constant 0 : index
    %c0_0 = arith.constant 0 : index
    %0 = vector.load %arg1[%c0, %c0_0] : memref<8x32xf32, #tpu.memory_space<vmem>>, vector<8x32xf32>
    %1 = arith.truncf %0 : vector<8x32xf32> to vector<8x32xbf16>
    %c0_1 = arith.constant 0 : index
    %c0_2 = arith.constant 0 : index
    %2 = vector.load %arg2[%c0_1, %c0_2] : memref<32x64xbf16, #tpu.memory_space<vmem>>, vector<32x64xbf16>
    %cst = arith.constant dense<0.000000e+00> : vector<8x64xf32>
    %3 = tpu.matmul %1, %2, %cst {dimension_numbers = #tpu.dot_dimension_numbers<[1], [0], [0], [1], [0, 0, 1, 1], [], []>} : vector<8x32xbf16>, vector<32x64xbf16>, vector<8x64xf32> -> vector<8x64xf32>
    %c0_3 = arith.constant 0 : index
    %c0_4 = arith.constant 0 : index
    %4 = vector.load %arg3[%c0_3, %c0_4] : memref<1x64xf32, #tpu.memory_space<vmem>>, vector<1x64xf32>
    %5 = vector.broadcast %4 : vector<1x64xf32> to vector<8x64xf32>
    %6 = arith.addf %3, %5 : vector<8x64xf32>
    %cst_5 = arith.constant 2.000000e-01 : f32
    %7 = vector.broadcast %cst_5 : f32 to vector<8x64xf32>
    %8 = arith.mulf %7, %6 : vector<8x64xf32>
    %9 = arith.maximumf %6, %8 : vector<8x64xf32>
    %10 = arith.truncf %9 : vector<8x64xf32> to vector<8x64xbf16>
    %c0_6 = arith.constant 0 : index
    %c0_7 = arith.constant 0 : index
    %11 = vector.load %arg4[%c0_6, %c0_7] : memref<64x32xbf16, #tpu.memory_space<vmem>>, vector<64x32xbf16>
    %cst_8 = arith.constant dense<0.000000e+00> : vector<8x32xf32>
    %12 = tpu.matmul %10, %11, %cst_8 {dimension_numbers = #tpu.dot_dimension_numbers<[1], [0], [0], [1], [0, 0, 1, 1], [], []>} : vector<8x64xbf16>, vector<64x32xbf16>, vector<8x32xf32> -> vector<8x32xf32>
    %c0_9 = arith.constant 0 : index
    %c0_10 = arith.constant 0 : index
    %13 = vector.load %arg5[%c0_9, %c0_10] : memref<1x32xf32, #tpu.memory_space<vmem>>, vector<1x32xf32>
    %14 = vector.broadcast %13 : vector<1x32xf32> to vector<8x32xf32>
    %15 = arith.addf %12, %14 : vector<8x32xf32>
    %cst_11 = arith.constant 2.000000e-01 : f32
    %16 = vector.broadcast %cst_11 : f32 to vector<8x32xf32>
    %17 = arith.mulf %16, %15 : vector<8x32xf32>
    %18 = arith.maximumf %15, %17 : vector<8x32xf32>
    %19 = arith.truncf %18 : vector<8x32xf32> to vector<8x32xbf16>
    %c0_12 = arith.constant 0 : index
    %c0_13 = arith.constant 0 : index
    %20 = vector.load %arg6[%c0_12, %c0_13] : memref<32x16xbf16, #tpu.memory_space<vmem>>, vector<32x16xbf16>
    %cst_14 = arith.constant dense<0.000000e+00> : vector<8x16xf32>
    %21 = tpu.matmul %19, %20, %cst_14 {dimension_numbers = #tpu.dot_dimension_numbers<[1], [0], [0], [1], [0, 0, 1, 1], [], []>} : vector<8x32xbf16>, vector<32x16xbf16>, vector<8x16xf32> -> vector<8x16xf32>
    %c0_15 = arith.constant 0 : index
    %c0_16 = arith.constant 0 : index
    %22 = vector.load %arg7[%c0_15, %c0_16] : memref<1x16xf32, #tpu.memory_space<vmem>>, vector<1x16xf32>
    %23 = vector.broadcast %22 : vector<1x16xf32> to vector<8x16xf32>
    %24 = arith.addf %21, %23 : vector<8x16xf32>
    %c0_17 = arith.constant 0 : index
    %c0_18 = arith.constant 0 : index
    %25 = vector.load %arg8[%c0_17, %c0_18] : memref<8x16xf32, #tpu.memory_space<vmem>>, vector<8x16xf32>
    tpu.vector_store %arg8[%c0_17, %c0_18], %24 {strides = array<i32>} : memref<8x16xf32, #tpu.memory_space<vmem>>, vector<8x16xf32>,
    return
  }
  func.func @transform_0(%arg0: i32) -> (i32, i32) {
    %c0_i32 = arith.constant 0 : i32
    %c0_i32_0 = arith.constant 0 : i32
    return %arg0, %c0_i32 : i32, i32
  }
  func.func @transform_1(%arg0: i32) -> (i32, i32) {
    %c0_i32 = arith.constant 0 : i32
    %c0_i32_0 = arith.constant 0 : i32
    %c0_i32_1 = arith.constant 0 : i32
    return %c0_i32, %c0_i32_0 : i32, i32
  }
  func.func @transform_2(%arg0: i32) -> (i32, i32) {
    %c0_i32 = arith.constant 0 : i32
    %c0_i32_0 = arith.constant 0 : i32
    %c0_i32_1 = arith.constant 0 : i32
    return %c0_i32, %c0_i32_0 : i32, i32
  }
  func.func @transform_3(%arg0: i32) -> (i32, i32) {
    %c0_i32 = arith.constant 0 : i32
    %c0_i32_0 = arith.constant 0 : i32
    %c0_i32_1 = arith.constant 0 : i32
    return %c0_i32, %c0_i32_0 : i32, i32
  }
  func.func @transform_4(%arg0: i32) -> (i32, i32) {
    %c0_i32 = arith.constant 0 : i32
    %c0_i32_0 = arith.constant 0 : i32
    %c0_i32_1 = arith.constant 0 : i32
    return %c0_i32, %c0_i32_0 : i32, i32
  }
  func.func @transform_5(%arg0: i32) -> (i32, i32) {
    %c0_i32 = arith.constant 0 : i32
    %c0_i32_0 = arith.constant 0 : i32
    %c0_i32_1 = arith.constant 0 : i32
    return %c0_i32, %c0_i32_0 : i32, i32
  }
  func.func @transform_6(%arg0: i32) -> (i32, i32) {
    %c0_i32 = arith.constant 0 : i32
    %c0_i32_0 = arith.constant 0 : i32
    %c0_i32_1 = arith.constant 0 : i32
    return %c0_i32, %c0_i32_0 : i32, i32
  }
  func.func @transform_7(%arg0: i32) -> (i32, i32) {
    %c0_i32 = arith.constant 0 : i32
    %c0_i32_0 = arith.constant 0 : i32
    return %arg0, %c0_i32 : i32, i32
  }
}

</mosaic_0001>

<llo_original>
// kernel: tpu_custom_call.1
$region0: #{tpu_custom_call.1}
  #allocation0 [shape = 'u32[]', space=smem, size = 0x4, offset = 0x4, fixed_abs, tag = 'smem constant byte address 0x4 - core index']
  #allocation1 [shape = 'u32[72,128]{1,0:T(1,128)}', space=vmem, size = 0x9000, scoped, tag = 'internal scratch']
  %s0 = inlined_call_operand.vmem [shape: f32[8,32], index: 0, kind: input, shape index: {}]
  %s1 = inlined_call_operand.vmem [shape: bf16[32,64], index: 1, kind: input, shape index: {}]
  %s2 = inlined_call_operand.vmem [shape: f32[1,64], index: 2, kind: input, shape index: {}]
  %s3 = inlined_call_operand.vmem [shape: bf16[64,32], index: 3, kind: input, shape index: {}]
  %s4 = inlined_call_operand.vmem [shape: f32[1,32], index: 4, kind: input, shape index: {}]
  %s5 = inlined_call_operand.vmem [shape: bf16[32,16], index: 5, kind: input, shape index: {}]
  %s6 = inlined_call_operand.vmem [shape: f32[1,16], index: 6, kind: input, shape index: {}]
  %s7 = inlined_call_operand.hbm [shape: f32[8,16], index: 7, kind: output, shape index: {}]
  %s8 = sld [smem:[#allocation0]]
  $region38: #{tpu_custom_call.1} parent=0
    _
  %s10 = ssub.s32 1, %s8
  %s11 = scalar_select 0, %s10, %s8
  $region1: #{tpu_custom_call.1} parent=0
    #allocation2 [shape = 'u8[4096]{0}', space=vmem, size = 0x1000, scoped, tag = 'output window, operand 0, single buffered']
    #allocation3 [shape = 's32[1]{0}', space=sflag, size = 0x4, scoped, tag = 'scoped memory for tpu_custom_call.1']
    %12 = vsyncpa [#allocation3], 0
    // Predicated region
    $region2: #{tpu_custom_call.1} parent=1 // pred_check
      _
    $region3: #{tpu_custom_call.1} parent=1 // pred_check_branch
      %14 = sbr.rel (0) target = $region5
    $region4: #{tpu_custom_call.1} parent=1 // pred_region
      _
    $region5: #{tpu_custom_call.1} parent=1 // pred_fallthru
      _
    // Predicated region
    $region6: #{tpu_custom_call.1} parent=1 // pred_check
      _
    $region7: #{tpu_custom_call.1} parent=1 // pred_check_branch
      %16 = sbr.rel (0) target = $region9
    $region8: #{tpu_custom_call.1} parent=1 // pred_region
      _
    $region9: #{tpu_custom_call.1} parent=1 // pred_fallthru
      _
    // Predicated region
    $region10: #{tpu_custom_call.1} parent=1 // pred_check
      _
    $region11: #{tpu_custom_call.1} parent=1 // pred_check_branch
      %18 = sbr.rel (0) target = $region13
    $region12: #{tpu_custom_call.1} parent=1 // pred_region
      _
    $region13: #{tpu_custom_call.1} parent=1 // pred_fallthru
      _
    // Predicated region
    $region14: #{tpu_custom_call.1} parent=1 // pred_check
      _
    $region15: #{tpu_custom_call.1} parent=1 // pred_check_branch
      %20 = sbr.rel (0) target = $region17
    $region16: #{tpu_custom_call.1} parent=1 // pred_region
      _
    $region17: #{tpu_custom_call.1} parent=1 // pred_fallthru
      _
    // Predicated region
    $region18: #{tpu_custom_call.1} parent=1 // pred_check
      _
    $region19: #{tpu_custom_call.1} parent=1 // pred_check_branch
      %22 = sbr.rel (0) target = $region21
    $region20: #{tpu_custom_call.1} parent=1 // pred_region
      _
    $region21: #{tpu_custom_call.1} parent=1 // pred_fallthru
      _
    // Predicated region
    $region22: #{tpu_custom_call.1} parent=1 // pred_check
      _
    $region23: #{tpu_custom_call.1} parent=1 // pred_check_branch
      %24 = sbr.rel (0) target = $region25
    $region24: #{tpu_custom_call.1} parent=1 // pred_region
      _
    $region25: #{tpu_custom_call.1} parent=1 // pred_fallthru
      _
    // Predicated region
    $region26: #{tpu_custom_call.1} parent=1 // pred_check
      _
    $region27: #{tpu_custom_call.1} parent=1 // pred_check_branch
      %26 = sbr.rel (0) target = $region29
    $region28: #{tpu_custom_call.1} parent=1 // pred_region
      _
    $region29: #{tpu_custom_call.1} parent=1 // pred_fallthru
      _
    %v28 = vld [vmem:[%s0] sm:$0xff]
    %v29 = vpack.c.bf16 %v28, %v28
    %v30 = vld [vmem:[%s1] sm:$0xf]
    %v31 = vld [vmem:[%s1 + $0x4] sm:$0xf]
    %v32 = vld [vmem:[%s1 + $0x8] sm:$0xf]
    %v33 = vld [vmem:[%s1 + $0xc] sm:$0xf]
    %v34 = vld [vmem:[%s2] sm:$0x1]
    %v36 = vperm.slane %v34, 0
    %v42 = vunpack.c.l.b16 %v30
    %v43 = vunpack.c.l.b16 %v31
    %v44 = vunpack.c.l.b16 %v32
    %v45 = vunpack.c.l.b16 %v33
    %v46 = vpack.c.b16 %v43, %v42
    %v47 = vpack.c.b16 %v45, %v44
    %vm50 = vcmask 261120
    %v52 = vsel %vm50, %v29, 0
    %54 = vmatpush.bf16.msra.mxu0 0
    %55 = vmatpush.bf16.msra.mxu0 0
    %56 = vmatpush.bf16.msra.mxu0 0
    %57 = vmatpush.bf16.msra.mxu0 0
    %58 = vmatpush.bf16.msra.mxu0 0
    %59 = vmatpush.bf16.msra.mxu0 0
    %60 = vmatpush.bf16.msra.mxu0 %v47
    %61 = vmatpush.bf16.msra.mxu0 %v46
    %62 = vmatmul.bf16.gmra.mxu0 %v52
    %v63 = vpop.f32.mrf.mxu0
    %v64 = vadd.f32 %v36, %v63
    %v65 = vpop.f32.mrf.mxu0
    %66 = vdwg.mxu0
    %v67 = vmul.f32 %v64, 0.2
    %v68 = vmax.f32 %v64, %v67
    %v69 = vpack.c.bf16 %v68, %v68
    %v70 = vld [vmem:[%s3] sm:$0xf]
    %v71 = vld [vmem:[%s3 + $0x4] sm:$0xf]
    %v72 = vld [vmem:[%s3 + $0x8] sm:$0xf]
    %v73 = vld [vmem:[%s3 + $0xc] sm:$0xf]
    %v74 = vld [vmem:[%s3 + $0x10] sm:$0xf]
    %v75 = vld [vmem:[%s3 + $0x14] sm:$0xf]
    %v76 = vld [vmem:[%s3 + $0x18] sm:$0xf]
    %v77 = vld [vmem:[%s3 + $0x1c] sm:$0xf]
    %v78 = vld [vmem:[%s4] sm:$0x1]
    %v80 = vperm.slane %v78, 0
    %v90 = vunpack.c.l.b16 %v70
    %v91 = vunpack.c.l.b16 %v71
    %v92 = vunpack.c.l.b16 %v72
    %v93 = vunpack.c.l.b16 %v73
    %v94 = vunpack.c.l.b16 %v74
    %v95 = vunpack.c.l.b16 %v75
    %v96 = vunpack.c.l.b16 %v76
    %v97 = vunpack.c.l.b16 %v77
    %v98 = vpack.c.b16 %v91, %v90
    %v99 = vpack.c.b16 %v93, %v92
    %v100 = vpack.c.b16 %v95, %v94
    %v101 = vpack.c.b16 %v97, %v96
    %vm106 = vcmask 523264
    %v108 = vsel %vm106, %v69, 0
    %110 = vmatpush.bf16.msra.mxu0 0
    %111 = vmatpush.bf16.msra.mxu0 0
    %112 = vmatpush.bf16.msra.mxu0 0
    %113 = vmatpush.bf16.msra.mxu0 0
    %114 = vmatpush.bf16.msra.mxu0 %v101
    %115 = vmatpush.bf16.msra.mxu0 %v100
    %116 = vmatpush.bf16.msra.mxu0 %v99
    %117 = vmatpush.bf16.msra.mxu0 %v98
    %118 = vmatmul.bf16.gmra.mxu0 %v108
    %v119 = vpop.f32.mrf.mxu0
    %v120 = vadd.f32 %v80, %v119
    %v121 = vpop.f32.mrf.mxu0
    %122 = vdwg.mxu0
    %v123 = vmul.f32 %v120, 0.2
    %v124 = vmax.f32 %v120, %v123
    %v125 = vpack.c.bf16 %v124, %v124
    %v126 = vld [vmem:[%s5] sm:$0xf]
    %v127 = vld [vmem:[%s5 + $0x4] sm:$0xf]
    %v128 = vld [vmem:[%s5 + $0x8] sm:$0xf]
    %v129 = vld [vmem:[%s5 + $0xc] sm:$0xf]
    %v130 = vld [vmem:[%s6] sm:$0x1]
    %v132 = vperm.slane %v130, 0
    %v138 = vunpack.c.l.b16 %v126
    %v139 = vunpack.c.l.b16 %v127
    %v140 = vunpack.c.l.b16 %v128
    %v141 = vunpack.c.l.b16 %v129
    %v142 = vpack.c.b16 %v139, %v138
    %v143 = vpack.c.b16 %v141, %v140
    %v147 = vsel %vm50, %v125, 0
    %149 = vmatpush.bf16.msra.mxu0 0
    %150 = vmatpush.bf16.msra.mxu0 0
    %151 = vmatpush.bf16.msra.mxu0 0
    %152 = vmatpush.bf16.msra.mxu0 0
    %153 = vmatpush.bf16.msra.mxu0 0
    %154 = vmatpush.bf16.msra.mxu0 0
    %155 = vmatpush.bf16.msra.mxu0 %v143
    %156 = vmatpush.bf16.msra.mxu0 %v142
    %157 = vmatmul.bf16.gmra.mxu0 %v147
    %v158 = vpop.f32.mrf.mxu0
    %v159 = vadd.f32 %v132, %v158
    %v160 = vpop.f32.mrf.mxu0
    %161 = vdwg.mxu0
    %vm162 = vcmask 130048
    %163 = vst.msk [vmem:[#allocation2] sm:$0xff] %vm162, %v159
    // Predicated region
    $region30: #{tpu_custom_call.1} parent=1 // pred_check
      _
    $region31: #{tpu_custom_call.1} parent=1 // pred_check_branch
      %165 = sbr.rel (0) target = $region33
    $region32: #{tpu_custom_call.1} parent=1 // pred_region
      %167 = vsyncadd [#allocation3], 0
      %s169 = sshll.u32 [#allocation2], 4
      %s170 = int_to_ptr.vmem [resolvable:$true] %s169
      %s171 = sshll.u32 %s7, 4
      %s172 = int_to_ptr.hbm [resolvable:$true] %s171
      %174 = dma.vmem_to_hbm [thread:$0]  %s170, 128, %s172, [#allocation3]
    $region33: #{tpu_custom_call.1} parent=1 // pred_fallthru
      _
    // Predicated region
    $region34: #{tpu_custom_call.1} parent=1 // pred_check
      _
    $region35: #{tpu_custom_call.1} parent=1 // pred_check_branch
      %176 = sbr.rel (0) target = $region37
    $region36: #{tpu_custom_call.1} parent=1 // pred_region
      %178 = dma.done [#allocation3], 128
    $region37: #{tpu_custom_call.1} parent=1 // pred_fallthru
      _
    %179 = vsyncpa [#allocation3], 1

</llo_original>
